<compile_context>
chip_gen: v7x
topology: tpu7x:2x2x1
jax: 0.10.0
libtpu: 0.0.40
codegen_flags: <defaults>
</compile_context>

<pallas_src>
import functools
import math

import jax
import jax.numpy as jnp
from jax.experimental import pallas as pl
from jax.experimental.pallas import tpu as pltpu


def _round_up(x, m):
    return ((x + m - 1) // m) * m


def _cdiv(a, b):
    return -(-a // b)


def _uncertainty_gate_kernel(x_ref, w_ref, b_ref, out_ref, acc_ref, *,
                             hw, n_hw_blocks):
    """One (batch block, spatial block) grid step.

    x_ref:   (block_n*C, block_hw)   input slab tile (any float dtype)
    w_ref:   (C, K)                  classifier weight (VMEM resident)
    b_ref:   (1, K)                  classifier bias  (VMEM resident)
    out_ref: (block_n, out_w)        packed output: pred lanes [0,K), unc lane K
    acc_ref: (block_n*C, 128) f32    narrow relu-sum accumulator (scratch)
    """
    j = pl.program_id(1)
    block_rows, block_hw = x_ref.shape
    num_channels, num_classes = w_ref.shape
    block_n = out_ref.shape[0]

    n_chunks = block_hw // 128
    rem = hw - (n_hw_blocks - 1) * block_hw     # valid lanes in the last spatial block
    t_full = rem // 128                         # chunks fully valid even on last block
    need_mask = rem < block_hw                  # static: only when HW is ragged
    inv_hw = 1.0 / float(hw)

    if need_mask:
        lane = jax.lax.broadcasted_iota(jnp.int32, (block_rows, 128), 1)
        is_last = (j == n_hw_blocks - 1) if n_hw_blocks > 1 else None

    # ---- hot streaming path: relu + per-chunk partial sums (pure VPU) --------
    psum = None
    for k in range(n_chunks):
        v = jnp.maximum(x_ref[:, pl.ds(k * 128, 128)].astype(jnp.float32), 0.0)
        if need_mask and k >= t_full:
            # Static count of valid lanes of chunk k when this is the LAST block.
            tail_k = max(0, min(128, rem - k * 128))
            if n_hw_blocks == 1:
                v = jnp.where(lane < tail_k, v, 0.0)           # fully static mask
            else:
                valid_k = jnp.where(is_last, tail_k, 128)      # scalar select
                v = jnp.where(lane < valid_k, v, 0.0)
        psum = v if psum is None else psum + v

    if n_hw_blocks == 1:
        acc_ref[...] = psum
    else:
        @pl.when(j == 0)
        def _first():
            acc_ref[...] = psum

        @pl.when(j > 0)
        def _accum():
            acc_ref[...] += psum

    # ---- cold finalize: pool -> classify -> softmax entropy -> packed store --
    def _finalize():
        logits = jnp.broadcast_to(b_ref[...].astype(jnp.float32),
                                  (block_n, num_classes))
        # Channel c of every sample in this batch block lives in rows n*C + c of
        # the flattened accumulator: sublane-strided gather over the NARROW acc
        # (each acc element touched exactly once overall), one lane reduce per
        # channel, VPU FMA into logits.  For large C, relayout pooled to
        # (block_n, C) and use a single MXU jnp.dot instead of this unroll.
        for c in range(num_channels):
            ch = acc_ref[pl.ds(c, block_n, stride=num_channels), :]     # (bn, 128)
            pooled_c = jnp.sum(ch, axis=-1, keepdims=True) * inv_hw     # (bn, 1)
            logits = logits + pooled_c * w_ref[pl.ds(c, 1), :].astype(jnp.float32)

        # entropy(softmax(z)) = log(sum e^s) - sum(e^s * s) / sum(e^s), s = z - max
        m = jnp.max(logits, axis=-1, keepdims=True)
        s = logits - m
        e = jnp.exp(s)
        z = jnp.sum(e, axis=-1, keepdims=True)
        ent = jnp.log(z) - jnp.sum(e * s, axis=-1, keepdims=True) / z   # exact divide

        out_ref[...] = jnp.zeros(out_ref.shape, out_ref.dtype)
        out_ref[:, 0:num_classes] = logits.astype(out_ref.dtype)
        out_ref[:, num_classes:num_classes + 1] = ent.astype(out_ref.dtype)

    if n_hw_blocks == 1:
        _finalize()
    else:
        pl.when(j == n_hw_blocks - 1)(_finalize)


def uncertainty_gate(x_nchw, weight, bias, *, block_n=None, block_hw=None,
                     target_block_bytes=4 * 1024 * 1024):
    """relu -> global avg pool -> Linear -> (predictions, softmax entropy).

    x_nchw: (N, C, H, W) float; weight: (K, C); bias: (K,).
    Returns (pred (N, K) f32, unc (N, 1) f32).

    target_block_bytes sizes the per-step x tile (4 MiB default; 6-8 MiB is
    better on v6e/v7x where per-step overhead is a larger fraction of the DMA).
    """
    N, C, H, W = x_nchw.shape
    K = weight.shape[0]
    HW = H * W
    hw_pad = _round_up(HW, 128)
    x_item = jnp.dtype(x_nchw.dtype).itemsize

    # ---- spatial (lane) tile: prefer covering all of HW in a single step -----
    if block_hw is None:
        max_hw = max(128, ((target_block_bytes // (8 * C * x_item)) // 128) * 128)
        block_hw = min(hw_pad, max_hw)
    else:
        block_hw = min(max(128, _round_up(block_hw, 128)), hw_pad)
    n_hw_blocks = _cdiv(HW, block_hw)

    # ---- batch (sublane) tile -------------------------------------------------
    if block_n is None:
        bn = max(1, target_block_bytes // (C * block_hw * x_item))
        # v7x megacore: keep >=4 outer (parallel) blocks when the batch allows.
        bn = min(bn, max(8, _round_up(_cdiv(N, 4), 8)))
    else:
        bn = max(1, block_n)
    if bn >= N:
        block_n = N                        # whole batch in one block: exact fit
    else:
        block_n = max(8, (bn // 8) * 8)    # keep inner blocks (8,128)-dense
    n_blocks = _cdiv(N, block_n)
    out_rows = n_blocks * block_n
    out_w = _round_up(K + 1, 128)          # packed: pred lanes [0,K), unc lane K

    # ---- layout glue: pure views, no padded copy of x -------------------------
    x2d = x_nchw.reshape(N * C, HW)
    w_t = weight.T                         # (C, K)
    b2 = bias.reshape(1, K)

    # ---- VMEM budget (double-buffered x + narrow acc + tiny params/out) ------
    x_blk = block_n * C * block_hw * x_item
    acc = block_n * C * 128 * 4
    params = (_round_up(C, 8) + 8) * _round_up(K, 128) * 4
    out_blk = _round_up(block_n, 8) * out_w * 4
    est = 2 * x_blk + acc + 2 * (params + out_blk) + (1 << 20)
    vmem_limit = min(2 * est, 48 * 1024 * 1024)          # headroom vs v7x 64 MiB
    vmem_limit = max(vmem_limit, est + 2 * 1024 * 1024, 16 * 1024 * 1024)

    kernel = functools.partial(_uncertainty_gate_kernel, hw=HW,
                               n_hw_blocks=n_hw_blocks)

    packed = pl.pallas_call(
        kernel,
        out_shape=jax.ShapeDtypeStruct((out_rows, out_w), jnp.float32),
        grid=(n_blocks, n_hw_blocks),
        in_specs=[
            pl.BlockSpec((block_n * C, block_hw), lambda i, j: (i, j)),
            pl.BlockSpec((C, K), lambda i, j: (0, 0)),      # resident weight
            pl.BlockSpec((1, K), lambda i, j: (0, 0)),      # resident bias
        ],
        out_specs=pl.BlockSpec((block_n, out_w), lambda i, j: (i, 0)),
        scratch_shapes=[pltpu.VMEM((block_n * C, 128), jnp.float32)],
        compiler_params=pltpu.CompilerParams(
            dimension_semantics=("parallel", "arbitrary"),
            vmem_limit_bytes=int(vmem_limit),
        ),
    )(x2d, w_t, b2)

    return packed[:N, :K], packed[:N, K:K + 1]


def _reference(x_nchw, weight, bias):
    """Pure-JAX reference matching the PyTorch module."""
    x = jnp.maximum(x_nchw, 0.0)
    pooled = jnp.mean(x, axis=(2, 3))                    # (N, C)
    logits = pooled @ weight.T + bias                    # (N, K)
    logp = jax.nn.log_softmax(logits, axis=1)
    p = jnp.exp(logp)
    unc = -jnp.sum(p * logp, axis=1, keepdims=True)
    return logits, unc


def _check(x, weight, bias, **kw):
    ref_pred, ref_unc = _reference(x, weight, bias)
    pred, unc = uncertainty_gate(x, weight, bias, **kw)
    jax.block_until_ready((pred, unc))
    assert pred.shape == ref_pred.shape and unc.shape == ref_unc.shape
    assert jnp.allclose(pred, ref_pred, atol=2e-5, rtol=1e-5), "pred mismatch"
    assert jnp.allclose(unc, ref_unc, atol=1e-4, rtol=1e-4), "unc mismatch"


if __name__ == "__main__":
    key = jax.random.PRNGKey(0)
    k_x, k_w, k_b, k_x2, k_x3 = jax.random.split(key, 5)

    # Small shapes consistent with the module: batch=2, num_features(C)=4,
    # spatial=16x16, num_classes=8.
    N, C, H, W = 2, 4, 16, 16
    num_classes = 8

    # Deterministic init (xavier_uniform_ weight as in initialize_weights;
    # bias from nn.Linear's default bounded uniform).
    fan_in, fan_out = C, num_classes
    limit = math.sqrt(6.0 / (fan_in + fan_out))
    weight = jax.random.uniform(k_w, (num_classes, C), jnp.float32, -limit, limit)
    b_bound = 1.0 / math.sqrt(fan_in)
    bias = jax.random.uniform(k_b, (num_classes,), jnp.float32, -b_bound, b_bound)

    x = jax.random.normal(k_x, (N, C, H, W), dtype=jnp.float32)

    # 1) Default auto tiling: single spatial step, whole batch in one block.
    _check(x, weight, bias)

    # 2) Forced multi-step spatial reduction (hw grid = 2): init/accum/finalize.
    _check(x, weight, bias, block_n=8, block_hw=128)

    # 3) Ragged spatial size (14x14 = 196 -> statically masked 128-lane tail),
    #    single spatial step, odd batch.
    x14 = jax.random.normal(k_x2, (3, C, 14, 14), dtype=jnp.float32)
    _check(x14, weight, bias)

    # 4) Ragged spatial + ragged batch blocks (N=10, block_n=8) with the
    #    dynamic last-step tail mask and multi-block parallel batch axis.
    x10 = jax.random.normal(k_x3, (10, C, 14, 14), dtype=jnp.float32)
    _check(x10, weight, bias, block_n=8, block_hw=128)

    print("KERNEL_OK")
</pallas_src>

<mosaic_0001>
module attributes {stable_mosaic.version = 11 : i64} {
  func.func @_uncertainty_gate_kernel(%arg0: i32, %arg1: i32, %arg2: memref<8x256xf32, #tpu.memory_space<vmem>>, %arg3: memref<4x8xf32, #tpu.memory_space<vmem>>, %arg4: memref<1x8xf32, #tpu.memory_space<vmem>>, %arg5: memref<2x128xf32, #tpu.memory_space<vmem>>, %arg6: memref<8x128xf32, #tpu.memory_space<vmem>>) attributes {dimension_semantics = [#tpu.dimension_semantics<parallel>, #tpu.dimension_semantics<arbitrary>], iteration_bounds = array<i64: 1, 1>, scalar_prefetch = 0 : i64, scratch_operands = 1 : i64, tpu.core_type = #tpu.core_type<tc>, window_params = [{transform_indices = @transform_0, window_bounds = array<i64: 8, 256>}, {pipeline_mode = #tpu.pipeline_mode<synchronous>, transform_indices = @transform_1, window_bounds = array<i64: 4, 8>}, {pipeline_mode = #tpu.pipeline_mode<synchronous>, transform_indices = @transform_2, window_bounds = array<i64: 1, 8>}, {transform_indices = @transform_3, window_bounds = array<i64: 2, 128>}]} {
    %c0 = arith.constant 0 : index
    %c0_0 = arith.constant 0 : index
    %0 = vector.load %arg2[%c0, %c0_0] : memref<8x256xf32, #tpu.memory_space<vmem>>, vector<8x128xf32>
    %cst = arith.constant 0.000000e+00 : f32
    %1 = vector.broadcast %cst : f32 to vector<8x128xf32>
    %2 = arith.maximumf %0, %1 : vector<8x128xf32>
    %c0_1 = arith.constant 0 : index
    %c128 = arith.constant 128 : index
    %3 = vector.load %arg2[%c0_1, %c128] : memref<8x256xf32, #tpu.memory_space<vmem>>, vector<8x128xf32>
    %cst_2 = arith.constant 0.000000e+00 : f32
    %4 = vector.broadcast %cst_2 : f32 to vector<8x128xf32>
    %5 = arith.maximumf %3, %4 : vector<8x128xf32>
    %6 = arith.addf %2, %5 : vector<8x128xf32>
    %c0_3 = arith.constant 0 : index
    %c0_4 = arith.constant 0 : index
    %7 = vector.load %arg6[%c0_3, %c0_4] : memref<8x128xf32, #tpu.memory_space<vmem>>, vector<8x128xf32>
    tpu.vector_store %arg6[%c0_3, %c0_4], %6 {strides = array<i32>} : memref<8x128xf32, #tpu.memory_space<vmem>>, vector<8x128xf32>,
    %c0_5 = arith.constant 0 : index
    %c0_6 = arith.constant 0 : index
    %8 = vector.load %arg4[%c0_5, %c0_6] : memref<1x8xf32, #tpu.memory_space<vmem>>, vector<1x8xf32>
    %9 = vector.shape_cast %8 : vector<1x8xf32> to vector<1x8xf32>
    %10 = vector.broadcast %9 : vector<1x8xf32> to vector<2x8xf32>
    %c0_7 = arith.constant 0 : index
    %c0_8 = arith.constant 0 : index
    %11 = tpu.strided_load %arg6[%c0_7, %c0_8] {strides = array<i32: 4, 1>} : memref<8x128xf32, #tpu.memory_space<vmem>>, vector<2x128xf32>
    %cst_9 = arith.constant dense<0.000000e+00> : vector<2xf32>
    %12 = vector.multi_reduction <add>, %11, %cst_9 [1] : vector<2x128xf32> to vector<2xf32>
    %13 = vector.shape_cast %12 : vector<2xf32> to vector<2x1xf32>
    %cst_10 = arith.constant 3.906250e-03 : f32
    %14 = vector.broadcast %cst_10 : f32 to vector<2x1xf32>
    %15 = arith.mulf %13, %14 : vector<2x1xf32>
    %c0_11 = arith.constant 0 : index
    %c0_12 = arith.constant 0 : index
    %16 = vector.load %arg3[%c0_11, %c0_12] : memref<4x8xf32, #tpu.memory_space<vmem>>, vector<1x8xf32>
    %17 = vector.broadcast %15 : vector<2x1xf32> to vector<2x8xf32>
    %18 = vector.broadcast %16 : vector<1x8xf32> to vector<2x8xf32>
    %19 = arith.mulf %17, %18 : vector<2x8xf32>
    %20 = arith.addf %10, %19 : vector<2x8xf32>
    %c1 = arith.constant 1 : index
    %c0_13 = arith.constant 0 : index
    %21 = tpu.strided_load %arg6[%c1, %c0_13] {strides = array<i32: 4, 1>} : memref<8x128xf32, #tpu.memory_space<vmem>>, vector<2x128xf32>
    %cst_14 = arith.constant dense<0.000000e+00> : vector<2xf32>
    %22 = vector.multi_reduction <add>, %21, %cst_14 [1] : vector<2x128xf32> to vector<2xf32>
    %23 = vector.shape_cast %22 : vector<2xf32> to vector<2x1xf32>
    %cst_15 = arith.constant 3.906250e-03 : f32
    %24 = vector.broadcast %cst_15 : f32 to vector<2x1xf32>
    %25 = arith.mulf %23, %24 : vector<2x1xf32>
    %c1_16 = arith.constant 1 : index
    %c0_17 = arith.constant 0 : index
    %26 = vector.load %arg3[%c1_16, %c0_17] : memref<4x8xf32, #tpu.memory_space<vmem>>, vector<1x8xf32>
    %27 = vector.broadcast %25 : vector<2x1xf32> to vector<2x8xf32>
    %28 = vector.broadcast %26 : vector<1x8xf32> to vector<2x8xf32>
    %29 = arith.mulf %27, %28 : vector<2x8xf32>
    %30 = arith.addf %20, %29 : vector<2x8xf32>
    %c2 = arith.constant 2 : index
    %c0_18 = arith.constant 0 : index
    %31 = tpu.strided_load %arg6[%c2, %c0_18] {strides = array<i32: 4, 1>} : memref<8x128xf32, #tpu.memory_space<vmem>>, vector<2x128xf32>
    %cst_19 = arith.constant dense<0.000000e+00> : vector<2xf32>
    %32 = vector.multi_reduction <add>, %31, %cst_19 [1] : vector<2x128xf32> to vector<2xf32>
    %33 = vector.shape_cast %32 : vector<2xf32> to vector<2x1xf32>
    %cst_20 = arith.constant 3.906250e-03 : f32
    %34 = vector.broadcast %cst_20 : f32 to vector<2x1xf32>
    %35 = arith.mulf %33, %34 : vector<2x1xf32>
    %c2_21 = arith.constant 2 : index
    %c0_22 = arith.constant 0 : index
    %36 = vector.load %arg3[%c2_21, %c0_22] : memref<4x8xf32, #tpu.memory_space<vmem>>, vector<1x8xf32>
    %37 = vector.broadcast %35 : vector<2x1xf32> to vector<2x8xf32>
    %38 = vector.broadcast %36 : vector<1x8xf32> to vector<2x8xf32>
    %39 = arith.mulf %37, %38 : vector<2x8xf32>
    %40 = arith.addf %30, %39 : vector<2x8xf32>
    %c3 = arith.constant 3 : index
    %c0_23 = arith.constant 0 : index
    %41 = tpu.strided_load %arg6[%c3, %c0_23] {strides = array<i32: 4, 1>} : memref<8x128xf32, #tpu.memory_space<vmem>>, vector<2x128xf32>
    %cst_24 = arith.constant dense<0.000000e+00> : vector<2xf32>
    %42 = vector.multi_reduction <add>, %41, %cst_24 [1] : vector<2x128xf32> to vector<2xf32>
    %43 = vector.shape_cast %42 : vector<2xf32> to vector<2x1xf32>
    %cst_25 = arith.constant 3.906250e-03 : f32
    %44 = vector.broadcast %cst_25 : f32 to vector<2x1xf32>
    %45 = arith.mulf %43, %44 : vector<2x1xf32>
    %c3_26 = arith.constant 3 : index
    %c0_27 = arith.constant 0 : index
    %46 = vector.load %arg3[%c3_26, %c0_27] : memref<4x8xf32, #tpu.memory_space<vmem>>, vector<1x8xf32>
    %47 = vector.broadcast %45 : vector<2x1xf32> to vector<2x8xf32>
    %48 = vector.broadcast %46 : vector<1x8xf32> to vector<2x8xf32>
    %49 = arith.mulf %47, %48 : vector<2x8xf32>
    %50 = arith.addf %40, %49 : vector<2x8xf32>
    %cst_28 = arith.constant dense<0xFF800000> : vector<2xf32>
    %51 = vector.multi_reduction <maximumf>, %50, %cst_28 [1] : vector<2x8xf32> to vector<2xf32>
    %52 = vector.shape_cast %51 : vector<2xf32> to vector<2x1xf32>
    %53 = vector.broadcast %52 : vector<2x1xf32> to vector<2x8xf32>
    %54 = arith.subf %50, %53 : vector<2x8xf32>
    %55 = math.exp %54 : vector<2x8xf32>
    %cst_29 = arith.constant dense<0.000000e+00> : vector<2xf32>
    %56 = vector.multi_reduction <add>, %55, %cst_29 [1] : vector<2x8xf32> to vector<2xf32>
    %57 = vector.shape_cast %56 : vector<2xf32> to vector<2x1xf32>
    %58 = math.log %57 : vector<2x1xf32>
    %59 = arith.mulf %55, %54 : vector<2x8xf32>
    %cst_30 = arith.constant dense<0.000000e+00> : vector<2xf32>
    %60 = vector.multi_reduction <add>, %59, %cst_30 [1] : vector<2x8xf32> to vector<2xf32>
    %61 = vector.shape_cast %60 : vector<2xf32> to vector<2x1xf32>
    %62 = arith.divf %61, %57 : vector<2x1xf32>
    %63 = arith.subf %58, %62 : vector<2x1xf32>
    %cst_31 = arith.constant 0.000000e+00 : f32
    %64 = vector.broadcast %cst_31 : f32 to vector<2x128xf32>
    %c0_32 = arith.constant 0 : index
    %c0_33 = arith.constant 0 : index
    %65 = vector.load %arg5[%c0_32, %c0_33] : memref<2x128xf32, #tpu.memory_space<vmem>>, vector<2x128xf32>
    tpu.vector_store %arg5[%c0_32, %c0_33], %64 {strides = array<i32>} : memref<2x128xf32, #tpu.memory_space<vmem>>, vector<2x128xf32>,
    %c0_34 = arith.constant 0 : index
    %c0_35 = arith.constant 0 : index
    %66 = vector.load %arg5[%c0_34, %c0_35] : memref<2x128xf32, #tpu.memory_space<vmem>>, vector<2x8xf32>
    tpu.vector_store %arg5[%c0_34, %c0_35], %50 {strides = array<i32>} : memref<2x128xf32, #tpu.memory_space<vmem>>, vector<2x8xf32>,
    %c0_36 = arith.constant 0 : index
    %c8 = arith.constant 8 : index
    %67 = vector.load %arg5[%c0_36, %c8] : memref<2x128xf32, #tpu.memory_space<vmem>>, vector<2x1xf32>
    tpu.vector_store %arg5[%c0_36, %c8], %63 {strides = array<i32>} : memref<2x128xf32, #tpu.memory_space<vmem>>, vector<2x1xf32>,
    return
  }
  func.func @transform_0(%arg0: i32, %arg1: i32) -> (i32, i32) {
    %c0_i32 = arith.constant 0 : i32
    return %arg0, %arg1 : i32, i32
  }
  func.func @transform_1(%arg0: i32, %arg1: i32) -> (i32, i32) {
    %c0_i32 = arith.constant 0 : i32
    %c0_i32_0 = arith.constant 0 : i32
    %c0_i32_1 = arith.constant 0 : i32
    return %c0_i32, %c0_i32_0 : i32, i32
  }
  func.func @transform_2(%arg0: i32, %arg1: i32) -> (i32, i32) {
    %c0_i32 = arith.constant 0 : i32
    %c0_i32_0 = arith.constant 0 : i32
    %c0_i32_1 = arith.constant 0 : i32
    return %c0_i32, %c0_i32_0 : i32, i32
  }
  func.func @transform_3(%arg0: i32, %arg1: i32) -> (i32, i32) {
    %c0_i32 = arith.constant 0 : i32
    %c0_i32_0 = arith.constant 0 : i32
    return %arg0, %c0_i32 : i32, i32
  }
}

</mosaic_0001>

<llo_original>
// kernel: tpu_custom_call.1
$region0: #{tpu_custom_call.1}
  #allocation0 [shape = 'u32[]', space=smem, size = 0x4, offset = 0x4, fixed_abs, tag = 'smem constant byte address 0x4 - core index']
  #allocation1 [shape = 'u32[144,128]{1,0:T(1,128)}', space=vmem, size = 0x12000, scoped, tag = 'internal scratch']
  #allocation2 [shape = 'f32[8,128]{1,0:T(8,128)}', space=vmem, size = 0x1000, scoped, tag = 'scratch operand']
  %s0 = inlined_call_operand.hbm [shape: f32[8,256], index: 0, kind: input, shape index: {}]
  %s1 = inlined_call_operand.hbm [shape: f32[4,8], index: 1, kind: input, shape index: {}]
  %s2 = inlined_call_operand.vmem [shape: f32[1,8], index: 2, kind: input, shape index: {}]
  %s3 = inlined_call_operand.hbm [shape: f32[2,128], index: 3, kind: output, shape index: {}]
  %s4 = sld [smem:[#allocation0]]
  $region30: #{tpu_custom_call.1} parent=0
    _
  %s6 = ssub.s32 1, %s4
  %s7 = scalar_select 0, %s6, %s4
  $region1: #{tpu_custom_call.1} parent=0
    #allocation3 [shape = 'u8[8192]{0}', space=vmem, size = 0x2000, scoped, tag = 'input window, operand 0, single buffered']
    #allocation4 [shape = 's32[1]{0}', space=sflag, size = 0x4, scoped, tag = 'scoped memory for tpu_custom_call.1']
    #allocation5 [shape = 's32[1]{0}', space=sflag, size = 0x4, scoped, tag = 'scoped memory for tpu_custom_call.1']
    #allocation6 [shape = 'u8[2048]{0}', space=vmem, size = 0x800, scoped, tag = 'input window, operand 1, single buffered']
    #allocation7 [shape = 's32[1]{0}', space=sflag, size = 0x4, scoped, tag = 'scoped memory for tpu_custom_call.1']
    #allocation8 [shape = 'u8[1024]{0}', space=vmem, size = 0x400, scoped, tag = 'output window, operand 0, single buffered']
    %8 = vsyncpa [#allocation4], 0
    %9 = vsyncpa [#allocation7], 0
    %10 = vsyncpa [#allocation5], 0
    // Predicated region
    $region2: #{tpu_custom_call.1} parent=1 // pred_check
      _
    $region3: #{tpu_custom_call.1} parent=1 // pred_check_branch
      %12 = sbr.rel (0) target = $region5
    $region4: #{tpu_custom_call.1} parent=1 // pred_region
      %s14 = ssub.s32 256, 256
      %15 = vsyncadd [#allocation4], %s14
      %s17 = sshll.u32 [#allocation3], 4
      %s18 = int_to_ptr.vmem [resolvable:$true] %s17
      %20 = dma.hbm_to_vmem [thread:$0]  %s0, 256, %s18, [#allocation4]
    $region5: #{tpu_custom_call.1} parent=1 // pred_fallthru
      _
    // Predicated region
    $region6: #{tpu_custom_call.1} parent=1 // pred_check
      _
    $region7: #{tpu_custom_call.1} parent=1 // pred_check_branch
      %22 = sbr.rel (0) target = $region9
    $region8: #{tpu_custom_call.1} parent=1 // pred_region
      %s24 = ssub.s32 64, 64
      %25 = vsyncadd [#allocation7], %s24
      %s27 = sshll.u32 [#allocation6], 4
      %s28 = int_to_ptr.vmem [resolvable:$true] %s27
      %30 = dma.hbm_to_vmem [thread:$0]  %s1, 64, %s28, [#allocation7]
    $region9: #{tpu_custom_call.1} parent=1 // pred_fallthru
      _
    // Predicated region
    $region10: #{tpu_custom_call.1} parent=1 // pred_check
      _
    $region11: #{tpu_custom_call.1} parent=1 // pred_check_branch
      %32 = sbr.rel (0) target = $region13
    $region12: #{tpu_custom_call.1} parent=1 // pred_region
      _
    $region13: #{tpu_custom_call.1} parent=1 // pred_fallthru
      _
    // Predicated region
    $region14: #{tpu_custom_call.1} parent=1 // pred_check
      _
    $region15: #{tpu_custom_call.1} parent=1 // pred_check_branch
      %34 = sbr.rel (0) target = $region17
    $region16: #{tpu_custom_call.1} parent=1 // pred_region
      %35 = dma.done [#allocation4], 256
    $region17: #{tpu_custom_call.1} parent=1 // pred_fallthru
      _
    // Predicated region
    $region18: #{tpu_custom_call.1} parent=1 // pred_check
      _
    $region19: #{tpu_custom_call.1} parent=1 // pred_check_branch
      %37 = sbr.rel (0) target = $region21
    $region20: #{tpu_custom_call.1} parent=1 // pred_region
      %38 = dma.done [#allocation7], 64
    $region21: #{tpu_custom_call.1} parent=1 // pred_fallthru
      _
    %v39 = vld [vmem:[#allocation3] sm:$0xff]
    %v40 = vmax.f32 %v39, 0.0
    %v41 = vld [vmem:[#allocation3 + $0x8] sm:$0xff]
    %v42 = vmax.f32 %v41, 0.0
    %v43 = vadd.f32 %v40, %v42
    %44 = vst [vmem:[#allocation2] sm:$0xff] %v43
    %v45 = vld [vmem:[%s2] sm:$0x1]
    %v47 = vlaneseq
    %v48 = vshrl.u32 %v47, 7
    %v49 = vsub.s32 0, %v48
    %v50 = vrot.slane %v45, %v49
    %v52 = vld [vmem:[#allocation2] ss:$4 sm:$0x3]
    %vm53 = vcmask 1041408
    %v54 = vsel %vm53, %v52, 0.0
    %55 = vadd.xlane.f32.xlu0 %v54
    %v56 = vpop.xlane.xlu0 %55
    %v57 = vmul.f32 %v56, 0.00390625
    %v58 = vld [vmem:[#allocation6] sm:$0x1]
    %v59 = vlaneseq
    %v60 = vshrl.u32 %v59, 7
    %v61 = vsub.s32 0, %v60
    %v62 = vrot.slane %v58, %v61
    %v63 = vmul.f32 %v57, %v62
    %v64 = vadd.f32 %v50, %v63
    %s65 = scalar_lea.vmem [#allocation2], 1
    %v66 = vld [vmem:[%s65] ss:$4 sm:$0x3]
    %v67 = vsel %vm53, %v66, 0.0
    %68 = vadd.xlane.f32.xlu0 %v67
    %v69 = vpop.xlane.xlu0 %68
    %v70 = vmul.f32 %v69, 0.00390625
    %v71 = vld [vmem:[#allocation6 + $0x1] sm:$0x1]
    %v72 = vlaneseq
    %v73 = vshrl.u32 %v72, 7
    %v74 = vsub.s32 0, %v73
    %v75 = vrot.slane %v71, %v74
    %v76 = vmul.f32 %v70, %v75
    %v77 = vadd.f32 %v64, %v76
    %s78 = scalar_lea.vmem [#allocation2], 2
    %v79 = vld [vmem:[%s78] ss:$4 sm:$0x3]
    %v80 = vsel %vm53, %v79, 0.0
    %81 = vadd.xlane.f32.xlu0 %v80
    %v82 = vpop.xlane.xlu0 %81
    %v83 = vmul.f32 %v82, 0.00390625
    %v84 = vld [vmem:[#allocation6 + $0x2] sm:$0x1]
    %v85 = vlaneseq
    %v86 = vshrl.u32 %v85, 7
    %v87 = vsub.s32 0, %v86
    %v88 = vrot.slane %v84, %v87
    %v89 = vmul.f32 %v83, %v88
    %v90 = vadd.f32 %v77, %v89
    %s91 = scalar_lea.vmem [#allocation2], 3
    %v92 = vld [vmem:[%s91] ss:$4 sm:$0x3]
    %v93 = vsel %vm53, %v92, 0.0
    %94 = vadd.xlane.f32.xlu0 %v93
    %v95 = vpop.xlane.xlu0 %94
    %v96 = vmul.f32 %v95, 0.00390625
    %v97 = vld [vmem:[#allocation6 + $0x3] sm:$0x1]
    %v98 = vlaneseq
    %v99 = vshrl.u32 %v98, 7
    %v100 = vsub.s32 0, %v99
    %v101 = vrot.slane %v97, %v100
    %v102 = vmul.f32 %v96, %v101
    %v103 = vadd.f32 %v90, %v102
    %vm104 = vcmask 58368
    %v105 = vsel %vm104, %v103, -inf
    %106 = vmax.xlane.f32.xlu0 %v105
    %v107 = vpop.xlane.xlu0 %106
    %v108 = vsub.f32 %v103, %v107
    %v109 = vmul.f32 %v108, 1.442695
    %v110 = vpow.pop %v109
    %v111 = vsel %vm104, %v110, 0.0
    %112 = vadd.xlane.f32.xlu0 %v111
    %v113 = vpop.xlane.xlu0 %112
    %v114 = vlog2.pop %v113
    %v115 = vmul.f32 %v114, 0.6931472
    %v116 = vmul.f32 %v110, %v108
    %v117 = vsel %vm104, %v116, 0.0
    %118 = vadd.xlane.f32.xlu0 %v117
    %v119 = vpop.xlane.xlu0 %118
    %v120 = vrcp.pop %v113
    %v121 = vmul.f32 %v119, %v120
    %v122 = vsub.f32 %v115, %v121
    %123 = vst [vmem:[#allocation8] sm:$0x3] 0.0
    %124 = vst.msk [vmem:[#allocation8] sm:$0x3] %vm104, %v103
    %vm125 = vcmask 66624
    %126 = vst.msk [vmem:[#allocation8] sm:$0x3] %vm125, %v122
    // Predicated region
    $region22: #{tpu_custom_call.1} parent=1 // pred_check
      _
    $region23: #{tpu_custom_call.1} parent=1 // pred_check_branch
      %128 = sbr.rel (0) target = $region25
    $region24: #{tpu_custom_call.1} parent=1 // pred_region
      %s130 = ssub.s32 32, 32
      %131 = vsyncadd [#allocation5], %s130
      %s133 = sshll.u32 [#allocation8], 4
      %s134 = int_to_ptr.vmem [resolvable:$true] %s133
      %136 = dma.vmem_to_hbm [thread:$0]  %s134, 32, %s3, [#allocation5]
    $region25: #{tpu_custom_call.1} parent=1 // pred_fallthru
      _
    // Predicated region
    $region26: #{tpu_custom_call.1} parent=1 // pred_check
      _
    $region27: #{tpu_custom_call.1} parent=1 // pred_check_branch
      %138 = sbr.rel (0) target = $region29
    $region28: #{tpu_custom_call.1} parent=1 // pred_region
      %139 = dma.done [#allocation5], 32
    $region29: #{tpu_custom_call.1} parent=1 // pred_fallthru
      _
    %140 = vsyncpa [#allocation4], 1
    %141 = vsyncpa [#allocation7], 1
    %142 = vsyncpa [#allocation5], 1

</llo_original>
